<compile_context>
chip_gen: v7x
topology: tpu7x:2x2x1
jax: 0.10.0
libtpu: 0.0.40
codegen_flags: <defaults>
</compile_context>

<pallas_src>
import functools

import jax
import jax.numpy as jnp
from jax.experimental import pallas as pl
from jax.experimental.pallas import tpu as pltpu

_LANE = 128
_MIB = 1024 * 1024


def _round_up(v, m):
    return (v + m - 1) // m * m


# ----------------------------------------------------------------------------- kernels
def _ndcn_kernel_resident(a_ref, x_ref, w_ref, b_ref, o_ref):
    """o = tanh((A_tile @ X) @ W + b), full contraction in one grid step."""
    ax = jnp.dot(a_ref[...], x_ref[...], preferred_element_type=jnp.float32)
    axw = jnp.dot(ax.astype(jnp.bfloat16), w_ref[...],
                  preferred_element_type=jnp.float32)
    o_ref[...] = jnp.tanh(axw + b_ref[...]).astype(o_ref.dtype)


def _ndcn_kernel_ktiled(a_ref, x_ref, w_ref, b_ref, o_ref, acc_ref):
    """K-tiled contraction: accumulate A_tile @ X_k in f32 scratch, epilogue at k==last."""
    k = pl.program_id(2)

    @pl.when(k == 0)
    def _():
        acc_ref[...] = jnp.zeros_like(acc_ref)

    acc_ref[...] += jnp.dot(a_ref[...], x_ref[...],
                            preferred_element_type=jnp.float32)

    @pl.when(k == pl.num_programs(2) - 1)
    def _():
        axw = jnp.dot(acc_ref[...].astype(jnp.bfloat16), w_ref[...],
                      preferred_element_type=jnp.float32)
        o_ref[...] = jnp.tanh(axw + b_ref[...]).astype(o_ref.dtype)


# ------------------------------------------------------------------------ configuration
def _vmem_budget_bytes():
    try:
        cap = int(pltpu.get_tpu_info().vmem_capacity_bytes)
    except Exception:
        cap = 64 * _MIB              # conservative fallback = v7x VMEM size
    return (cap * 3) // 4            # leave headroom for compiler scratch / spills


def _resident_vmem_bytes(tm, n_pad, f_in_pad, f_out_pad):
    return (2 * tm * n_pad * 2              # A row strip (bf16), double buffered
            + 2 * n_pad * f_in_pad * 2      # X state (bf16), double buffered
            + 2 * f_in_pad * f_out_pad * 2  # W (bf16)
            + 2 * f_out_pad * 4             # bias (f32)
            + 2 * tm * f_out_pad * 4        # output tile (f32), double buffered
            + tm * f_in_pad * 6             # A@X intermediate (f32 + bf16 recast)
            + 2 * _MIB)                     # misc headroom


def _ktiled_vmem_bytes(tm, tk, f_in_pad, f_out_pad):
    return (2 * tm * tk * 2
            + 2 * tk * f_in_pad * 2
            + 2 * f_in_pad * f_out_pad * 2
            + 2 * f_out_pad * 4
            + 2 * tm * f_out_pad * 4
            + tm * f_in_pad * 4             # f32 accumulator scratch
            + tm * f_in_pad * 6
            + 2 * _MIB)


def _pick_config(n_pad, f_in_pad, f_out_pad, budget, force_ktiled, max_tm):
    if not force_ktiled:
        # Prefer the fully-resident contraction with the biggest row tile that fits:
        # fewest grid steps (~0.35 us/step overhead) and A streamed exactly once.
        for tm in (n_pad, 1024, 512, 256, 128):
            if tm > n_pad or n_pad % tm:
                continue
            if max_tm is not None and tm > max_tm:
                continue
            if _resident_vmem_bytes(tm, n_pad, f_in_pad, f_out_pad) <= budget:
                return "resident", tm, None
    # K-tiled fallback: per-step VMEM independent of N (large graphs / v7x 64 MiB).
    for tm in (256, 128):
        if n_pad % tm:
            continue
        if max_tm is not None and tm > max_tm:
            continue
        for tk in (4096, 2048, 1024, 512, 256, 128):
            if tk > n_pad or n_pad % tk:
                continue
            if force_ktiled and tk == n_pad and n_pad > 128:
                continue  # when forced (testing), actually exercise the accumulation
            if _ktiled_vmem_bytes(tm, tk, f_in_pad, f_out_pad) <= budget:
                return "ktiled", tm, tk
    return "ktiled", 128, 128


# ------------------------------------------------------------------------ param prepare
def prepare_ndcn_gcn_params(a_hat, w, b):
    """Pad + cast the grid-invariant GCN operands ONCE (hoisted out of the odefunc)."""
    n = a_hat.shape[0]
    f_in, f_out = w.shape
    n_pad = _round_up(n, _LANE)
    f_in_pad = _round_up(f_in, _LANE)
    f_out_pad = _round_up(f_out, _LANE)
    a_p = jnp.zeros((n_pad, n_pad), jnp.bfloat16).at[:n, :n].set(
        a_hat.astype(jnp.bfloat16))
    w_p = jnp.zeros((f_in_pad, f_out_pad), jnp.bfloat16).at[:f_in, :f_out].set(
        w.astype(jnp.bfloat16))
    b_p = jnp.zeros((1, f_out_pad), jnp.float32).at[:, :f_out].set(
        jnp.reshape(b, (1, -1)).astype(jnp.float32))
    return {"a_p": a_p, "w_p": w_p, "b_p": b_p, "n": n, "f_in": f_in, "f_out": f_out}


# ----------------------------------------------------------------------------- forward
def _ndcn_apply(a_p, w_p, b_p, n, f_in, f_out, x, *,
                force_ktiled=False, max_tm=None):
    squeeze = (x.ndim == 2)
    if squeeze:
        x = x[None]
    bsz = x.shape[0]
    n_pad = a_p.shape[0]
    f_in_pad, f_out_pad = w_p.shape

    if x.shape[1:] == (n_pad, f_in_pad):
        x_p = x.astype(jnp.bfloat16)
    else:
        x_p = jnp.zeros((bsz, n_pad, f_in_pad), jnp.bfloat16).at[
            :, :n, :f_in].set(x.astype(jnp.bfloat16))

    budget = _vmem_budget_bytes()
    path, tm, tk = _pick_config(n_pad, f_in_pad, f_out_pad, budget,
                                force_ktiled, max_tm)
    n_row_tiles = n_pad // tm

    out_shape = jax.ShapeDtypeStruct((bsz, n_pad, f_out_pad), jnp.float32)
    flops = int(bsz * (2 * n_pad * n_pad * f_in_pad
                       + 2 * n_pad * f_in_pad * f_out_pad))
    transc = int(bsz * n_pad * f_out_pad)
    out_bytes = bsz * n_pad * f_out_pad * 4

    if path == "resident":
        if n_row_tiles > 1:
            # Row tile outer, batch inner: each A strip is fetched once, reused
            # across all batched ODE states.
            grid = (n_row_tiles, bsz)
            a_map = lambda r, bi: (r, 0)
            x_map = lambda r, bi: (bi, 0, 0)
            p_map = lambda r, bi: (0, 0)
            o_map = lambda r, bi: (bi, r, 0)
        else:
            # Single row strip: A is resident anyway; batch axis first so both
            # v7x TensorCores get work (grid extent >= 2 on the leading axis).
            grid = (bsz, n_row_tiles)
            a_map = lambda bi, r: (r, 0)
            x_map = lambda bi, r: (bi, 0, 0)
            p_map = lambda bi, r: (0, 0)
            o_map = lambda bi, r: (bi, r, 0)

        grid_spec = pltpu.PrefetchScalarGridSpec(
            num_scalar_prefetch=0,
            grid=grid,
            in_specs=[
                pl.BlockSpec((tm, n_pad), a_map),               # A_hat row strip
                pl.BlockSpec((None, n_pad, f_in_pad), x_map),   # X (batch squeezed)
                pl.BlockSpec((f_in_pad, f_out_pad), p_map),     # W (resident)
                pl.BlockSpec((1, f_out_pad), p_map),            # bias (resident)
            ],
            out_specs=pl.BlockSpec((None, tm, f_out_pad), o_map),
        )
        kernel = _ndcn_kernel_resident
        dims = ("parallel", "parallel")
        bytes_accessed = int(a_p.size * 2 + n_row_tiles * x_p.size * 2
                             + w_p.size * 2 + b_p.size * 4 + out_bytes)
    else:
        n_k_tiles = n_pad // tk
        grid = (n_row_tiles, bsz, n_k_tiles)
        grid_spec = pltpu.PrefetchScalarGridSpec(
            num_scalar_prefetch=0,
            grid=grid,
            in_specs=[
                pl.BlockSpec((tm, tk), lambda r, bi, k: (r, k)),
                pl.BlockSpec((None, tk, f_in_pad), lambda r, bi, k: (bi, k, 0)),
                pl.BlockSpec((f_in_pad, f_out_pad), lambda r, bi, k: (0, 0)),
                pl.BlockSpec((1, f_out_pad), lambda r, bi, k: (0, 0)),
            ],
            out_specs=pl.BlockSpec((None, tm, f_out_pad),
                                   lambda r, bi, k: (bi, r, 0)),
            scratch_shapes=[pltpu.VMEM((tm, f_in_pad), jnp.float32)],
        )
        kernel = _ndcn_kernel_ktiled
        dims = ("parallel", "parallel", "arbitrary")
        bytes_accessed = int(bsz * a_p.size * 2 + n_row_tiles * x_p.size * 2
                             + w_p.size * 2 + b_p.size * 4 + out_bytes)
        # TODO(synk): pack 2 batch states into a 256-lane RHS (v6e/v7x MXU width)
        #             to halve A re-streaming in this K-tiled regime.

    out = pl.pallas_call(
        kernel,
        out_shape=out_shape,
        grid_spec=grid_spec,
        compiler_params=pltpu.CompilerParams(
            dimension_semantics=dims,
            vmem_limit_bytes=int(budget),
        ),
        cost_estimate=pl.CostEstimate(flops=flops, transcendentals=transc,
                                      bytes_accessed=bytes_accessed),
    )(a_p, x_p, w_p, b_p)

    out = out[:, :n, :f_out]
    return out[0] if squeeze else out


def ndcn_odefunc_forward(a_hat, x, w, b, *, force_ktiled=False, max_tm=None):
    """tanh(A_hat @ X @ W + b) for one state [N, F] or a batch of states [B, N, F]."""
    p = prepare_ndcn_gcn_params(a_hat, w, b)
    return _ndcn_apply(p["a_p"], p["w_p"], p["b_p"], p["n"], p["f_in"], p["f_out"],
                       x, force_ktiled=force_ktiled, max_tm=max_tm)


def make_ndcn_odefunc(a_hat, w, b):
    """Return a jitted odefunc(t, x) with A_hat / W / b padded + cast exactly once
    (the odefunc is called many times per ODE trajectory)."""
    p = prepare_ndcn_gcn_params(a_hat, w, b)
    apply_fn = functools.partial(_ndcn_apply, p["a_p"], p["w_p"], p["b_p"],
                                 p["n"], p["f_in"], p["f_out"])

    @jax.jit
    def odefunc(t, x):
        del t
        return apply_fn(x)

    return odefunc


def build_normalized_adjacency(edge_index, num_nodes):
    """Dense A_hat = D^{-1/2} (A + I) D^{-1/2} from a [2, E] edge_index.

    Duplicate edges accumulate (scatter-add), matching torch_geometric GCNConv.
    """
    src, dst = edge_index
    adj = jnp.zeros((num_nodes, num_nodes), jnp.float32)
    adj = adj.at[dst, src].add(1.0)                       # message from src -> dst
    adj = adj + jnp.eye(num_nodes, dtype=jnp.float32)     # self loops
    deg = jnp.sum(adj, axis=1)
    d_inv_sqrt = jnp.where(deg > 0, 1.0 / jnp.sqrt(deg), 0.0)
    return d_inv_sqrt[:, None] * adj * d_inv_sqrt[None, :]


if __name__ == "__main__":
    key = jax.random.PRNGKey(0)
    k_x, k_w, k_b, k_x2 = jax.random.split(key, 4)

    # --- Problem 1: small NDCN-style graph, batch of ODE-evaluation states. ----------
    num_nodes, input_size, num_eval = 16, 32, 4
    x0 = jax.random.normal(k_x, (num_nodes, input_size), jnp.float32)
    scales = jnp.linspace(0.5, 1.25, num_eval, dtype=jnp.float32)
    xb = scales[:, None, None] * x0[None]                 # [num_eval, N, F]

    idx = jnp.arange(num_nodes)
    src = jnp.concatenate([idx, (idx + 1) % num_nodes])
    dst = jnp.concatenate([(idx + 1) % num_nodes, idx])
    a_hat = build_normalized_adjacency(jnp.stack([src, dst], axis=0), num_nodes)

    scale = jnp.sqrt(6.0 / (input_size + input_size))
    w = jax.random.uniform(k_w, (input_size, input_size), jnp.float32,
                           minval=-scale, maxval=scale)
    b = 0.01 * jax.random.normal(k_b, (1, input_size), jnp.float32)

    # Cached-parameter, jitted odefunc (padding of A_hat/W/b hoisted out of the call).
    odefunc = make_ndcn_odefunc(a_hat, w, b)
    out = jax.block_until_ready(odefunc(0.0, xb))          # batched eval states
    out_single = jax.block_until_ready(odefunc(0.1, x0))   # single state forward(t, x)

    ref = jnp.tanh(jnp.einsum("nm,bmf,fg->bng", a_hat, xb, w) + b)
    ref_single = jnp.tanh(a_hat @ (x0 @ w) + b)
    assert out.shape == (num_eval, num_nodes, input_size)
    assert out_single.shape == (num_nodes, input_size)
    assert jnp.allclose(out, ref, atol=2e-2, rtol=2e-2)
    assert jnp.allclose(out_single, ref_single, atol=2e-2, rtol=2e-2)

    # --- Problem 2: larger graph; exercise the row-tiled resident path (rows outer,
    #     batch inner -> A streamed once) and the K-tiled accumulator path. ----------
    num_nodes2, num_eval2 = 160, 2
    x2 = jax.random.normal(k_x2, (num_eval2, num_nodes2, input_size), jnp.float32)
    idx2 = jnp.arange(num_nodes2)
    src2 = jnp.concatenate([idx2, (idx2 + 1) % num_nodes2])
    dst2 = jnp.concatenate([(idx2 + 1) % num_nodes2, idx2])
    a_hat2 = build_normalized_adjacency(jnp.stack([src2, dst2], axis=0), num_nodes2)

    out2 = jax.block_until_ready(ndcn_odefunc_forward(a_hat2, x2, w, b))
    out2_rows = jax.block_until_ready(
        ndcn_odefunc_forward(a_hat2, x2, w, b, max_tm=128))          # rows>1 resident
    out2_k = jax.block_until_ready(
        ndcn_odefunc_forward(a_hat2, x2, w, b, force_ktiled=True))   # K-tiled path
    ref2 = jnp.tanh(jnp.einsum("nm,bmf,fg->bng", a_hat2, x2, w) + b)
    assert jnp.allclose(out2, ref2, atol=2e-2, rtol=2e-2)
    assert jnp.allclose(out2_rows, ref2, atol=2e-2, rtol=2e-2)
    assert jnp.allclose(out2_k, ref2, atol=2e-2, rtol=2e-2)

    print("KERNEL_OK")
</pallas_src>

<mosaic_0001>
module attributes {stable_mosaic.version = 11 : i64} {
  func.func @_ndcn_kernel_resident(%arg0: i32, %arg1: i32, %arg2: memref<128x128xbf16, #tpu.memory_space<vmem>>, %arg3: memref<1x128x128xbf16, #tpu.memory_space<vmem>>, %arg4: memref<128x128xbf16, #tpu.memory_space<vmem>>, %arg5: memref<1x128xf32, #tpu.memory_space<vmem>>, %arg6: memref<1x128x128xf32, #tpu.memory_space<vmem>>) attributes {dimension_semantics = [#tpu.dimension_semantics<parallel>, #tpu.dimension_semantics<parallel>], iteration_bounds = array<i64: 4, 1>, scalar_prefetch = 0 : i64, scratch_operands = 0 : i64, tpu.core_type = #tpu.core_type<tc>, window_params = [{transform_indices = @transform_0, window_bounds = array<i64: 128, 128>}, {transform_indices = @transform_1, window_bounds = array<i64: 1, 128, 128>}, {pipeline_mode = #tpu.pipeline_mode<synchronous>, transform_indices = @transform_2, window_bounds = array<i64: 128, 128>}, {pipeline_mode = #tpu.pipeline_mode<synchronous>, transform_indices = @transform_3, window_bounds = array<i64: 1, 128>}, {transform_indices = @transform_4, window_bounds = array<i64: 1, 128, 128>}]} {
    %c0 = arith.constant 0 : index
    %c0_0 = arith.constant 0 : index
    %0 = vector.load %arg2[%c0, %c0_0] : memref<128x128xbf16, #tpu.memory_space<vmem>>, vector<128x128xbf16>
    %c0_1 = arith.constant 0 : index
    %c0_2 = arith.constant 0 : index
    %c0_3 = arith.constant 0 : index
    %1 = vector.load %arg3[%c0_1, %c0_2, %c0_3] : memref<1x128x128xbf16, #tpu.memory_space<vmem>>, vector<1x128x128xbf16>
    %2 = vector.shape_cast %1 : vector<1x128x128xbf16> to vector<128x128xbf16>
    %cst = arith.constant dense<0.000000e+00> : vector<128x128xf32>
    %3 = tpu.matmul %0, %2, %cst {dimension_numbers = #tpu.dot_dimension_numbers<[1], [0], [0], [1], [0, 0, 1, 1], [], []>} : vector<128x128xbf16>, vector<128x128xbf16>, vector<128x128xf32> -> vector<128x128xf32>
    %4 = arith.truncf %3 : vector<128x128xf32> to vector<128x128xbf16>
    %c0_4 = arith.constant 0 : index
    %c0_5 = arith.constant 0 : index
    %5 = vector.load %arg4[%c0_4, %c0_5] : memref<128x128xbf16, #tpu.memory_space<vmem>>, vector<128x128xbf16>
    %cst_6 = arith.constant dense<0.000000e+00> : vector<128x128xf32>
    %6 = tpu.matmul %4, %5, %cst_6 {dimension_numbers = #tpu.dot_dimension_numbers<[1], [0], [0], [1], [0, 0, 1, 1], [], []>} : vector<128x128xbf16>, vector<128x128xbf16>, vector<128x128xf32> -> vector<128x128xf32>
    %c0_7 = arith.constant 0 : index
    %c0_8 = arith.constant 0 : index
    %7 = vector.load %arg5[%c0_7, %c0_8] : memref<1x128xf32, #tpu.memory_space<vmem>>, vector<1x128xf32>
    %8 = vector.broadcast %7 : vector<1x128xf32> to vector<128x128xf32>
    %9 = arith.addf %6, %8 : vector<128x128xf32>
    %10 = math.tanh %9 : vector<128x128xf32>
    %c0_9 = arith.constant 0 : index
    %c0_10 = arith.constant 0 : index
    %c0_11 = arith.constant 0 : index
    %11 = vector.load %arg6[%c0_9, %c0_10, %c0_11] : memref<1x128x128xf32, #tpu.memory_space<vmem>>, vector<1x128x128xf32>
    %12 = vector.shape_cast %11 : vector<1x128x128xf32> to vector<128x128xf32>
    %13 = vector.shape_cast %10 : vector<128x128xf32> to vector<1x128x128xf32>
    tpu.vector_store %arg6[%c0_9, %c0_10, %c0_11], %13 {strides = array<i32>} : memref<1x128x128xf32, #tpu.memory_space<vmem>>, vector<1x128x128xf32>,
    return
  }
  func.func @transform_0(%arg0: i32, %arg1: i32) -> (i32, i32) {
    %c0_i32 = arith.constant 0 : i32
    %c0_i32_0 = arith.constant 0 : i32
    return %arg1, %c0_i32 : i32, i32
  }
  func.func @transform_1(%arg0: i32, %arg1: i32) -> (i32, i32, i32) {
    %c0_i32 = arith.constant 0 : i32
    %c0_i32_0 = arith.constant 0 : i32
    %c0_i32_1 = arith.constant 0 : i32
    return %arg0, %c0_i32, %c0_i32_0 : i32, i32, i32
  }
  func.func @transform_2(%arg0: i32, %arg1: i32) -> (i32, i32) {
    %c0_i32 = arith.constant 0 : i32
    %c0_i32_0 = arith.constant 0 : i32
    %c0_i32_1 = arith.constant 0 : i32
    return %c0_i32, %c0_i32_0 : i32, i32
  }
  func.func @transform_3(%arg0: i32, %arg1: i32) -> (i32, i32) {
    %c0_i32 = arith.constant 0 : i32
    %c0_i32_0 = arith.constant 0 : i32
    %c0_i32_1 = arith.constant 0 : i32
    return %c0_i32, %c0_i32_0 : i32, i32
  }
  func.func @transform_4(%arg0: i32, %arg1: i32) -> (i32, i32, i32) {
    %c0_i32 = arith.constant 0 : i32
    %c0_i32_0 = arith.constant 0 : i32
    return %arg0, %arg1, %c0_i32 : i32, i32, i32
  }
}

</mosaic_0001>

<llo_original>
// kernel: odefunc.1
$region0: #{odefunc.1}
  #allocation0 [shape = 'u32[]', space=smem, size = 0x4, offset = 0x4, fixed_abs, tag = 'smem constant byte address 0x4 - core index']
  #allocation1 [shape = 'u32[144,128]{1,0:T(1,128)}', space=vmem, size = 0x12000, scoped, tag = 'internal scratch']
  %s0 = inlined_call_operand.vmem [shape: bf16[128,128], index: 0, kind: input, shape index: {}]
  %s1 = inlined_call_operand.vmem [shape: bf16[4,128,128], index: 1, kind: input, shape index: {}]
  %s2 = inlined_call_operand.vmem [shape: bf16[128,128], index: 2, kind: input, shape index: {}]
  %s3 = inlined_call_operand.vmem [shape: f32[1,128], index: 3, kind: input, shape index: {}]
  %s4 = inlined_call_operand.vmem [shape: f32[4,128,128], index: 4, kind: output, shape index: {}]
  %s5 = sld [smem:[#allocation0]]
  $region49: #{odefunc.1} parent=0
    _
  %s7 = ssub.s32 1, %s5
  %s8 = scalar_select 0, %s7, %s5
  loop: start=0, step=1, limit=6
  $region2: #{odefunc.1} parent=0 // loop_pre_header
    _
  $region3: #{odefunc.1} parent=0 // loop_header
    %s10 = sphi 0, %s14
    %p11 = scmp.ge.s32.totalorder %s10, 6
    %s17 = sphi 0, %s29
    %s18 = sphi 0, %s25
    %s19 = sphi 0, %s17
    %s20 = sphi 0, %s18
    %s21 = sphi 0, %s19
    %s22 = sphi 0, %s20
    %s32 = sphi 0, %s34
    %s35 = sphi 0, %s32
    %s36 = sphi 0, %s35
    %s52 = sphi 0, %s36
    %s58 = sphi 0, %s60
    %s61 = sphi 0, %s58
    %s62 = sphi 0, %s61
    %s78 = sphi 0, %s62
    %s82 = sphi 0, %s82
    %s84 = sphi 0, %s82
    %s85 = sphi 0, %s84
    %s99 = sphi 0, %s85
    %s103 = sphi 0, %s103
    %s105 = sphi 0, %s103
    %s106 = sphi 0, %s105
    %s120 = sphi 0, %s106
    %s128 = sphi 0, %s130
    %s131 = sphi 0, %s128
    %s132 = sphi 0, %s131
    %s148 = sphi 0, %s132
  $region4: #{odefunc.1} parent=0 // loop_header_branch
    %13 = sbr.rel (%p11) target = $region8
  $region5: #{odefunc.1} parent=0 // loop_body
    %s15 = ssub.s32 %s10, 1
    %s16 = ssub.s32 %s10, 2
    %s23 = sadd.s32 1, %s18
    %p24 = scmp.ge.s32.totalorder %s23, 1
    %s25 = scalar_select %p24, 0, %s23
    %s26 = sadd.s32 1, %s17
    %s27 = scalar_select %p24, %s26, %s17
    %p28 = scmp.ge.s32.totalorder %s27, 4
    %s29 = scalar_select %p28, 0, %s27
    %s30 = ssub.s32 %s18, %s25
    %p31 = scmp.eq.s32.totalorder %s30, 0
    %s33 = sadd.s32 %s32, 1
    %s34 = scalar_select %p31, %s32, %s33
    %p37 = pneg %p31
    %p38 = scmp.eq.s32.totalorder %s10, 3
    %p39 = por %p37, %p38
    %p40 = scmp.ne.s32.totalorder %s32, %s35
    %p41 = scmp.eq.s32.totalorder %s10, 0
    %p42 = por %p40, %p41
    %p43 = scmp.ne.s32.totalorder %s32, %s35
    %p44 = scmp.eq.s32.totalorder %s15, 3
    %p45 = por %p43, %p44
    %p46 = scmp.ne.s32.totalorder %s35, %s36
    %p47 = scmp.eq.s32.totalorder %s15, 0
    %p48 = por %p46, %p47
    %p49 = scmp.ne.s32.totalorder %s35, %s36
    %p50 = scmp.eq.s32.totalorder %s16, 3
    %p51 = por %p49, %p50
    %p53 = scmp.ne.s32.totalorder %s36, %s52
    %p54 = scmp.eq.s32.totalorder %s16, 0
    %p55 = por %p53, %p54
    %s56 = ssub.s32 %s17, %s29
    %p57 = scmp.eq.s32.totalorder %s56, 0
    %s59 = sadd.s32 %s58, 1
    %s60 = scalar_select %p57, %s58, %s59
    %p63 = pneg %p57
    %p64 = scmp.eq.s32.totalorder %s10, 3
    %p65 = por %p63, %p64
    %p66 = scmp.ne.s32.totalorder %s58, %s61
    %p67 = scmp.eq.s32.totalorder %s10, 0
    %p68 = por %p66, %p67
    %p69 = scmp.ne.s32.totalorder %s58, %s61
    %p70 = scmp.eq.s32.totalorder %s15, 3
    %p71 = por %p69, %p70
    %p72 = scmp.ne.s32.totalorder %s61, %s62
    %p73 = scmp.eq.s32.totalorder %s15, 0
    %p74 = por %p72, %p73
    %p75 = scmp.ne.s32.totalorder %s61, %s62
    %p76 = scmp.eq.s32.totalorder %s16, 3
    %p77 = por %p75, %p76
    %p79 = scmp.ne.s32.totalorder %s62, %s78
    %p80 = scmp.eq.s32.totalorder %s16, 0
    %p81 = por %p79, %p80
    %s83 = sadd.s32 %s82, 1
    %p86 = scmp.eq.s32.totalorder %s10, 3
    %p87 = scmp.ne.s32.totalorder %s82, %s84
    %p88 = scmp.eq.s32.totalorder %s10, 0
    %p89 = por %p87, %p88
    %p90 = scmp.ne.s32.totalorder %s82, %s84
    %p91 = scmp.eq.s32.totalorder %s15, 3
    %p92 = por %p90, %p91
    %p93 = scmp.ne.s32.totalorder %s84, %s85
    %p94 = scmp.eq.s32.totalorder %s15, 0
    %p95 = por %p93, %p94
    %p96 = scmp.ne.s32.totalorder %s84, %s85
    %p97 = scmp.eq.s32.totalorder %s16, 3
    %p98 = por %p96, %p97
    %p100 = scmp.ne.s32.totalorder %s85, %s99
    %p101 = scmp.eq.s32.totalorder %s16, 0
    %p102 = por %p100, %p101
    %s104 = sadd.s32 %s103, 1
    %p107 = scmp.eq.s32.totalorder %s10, 3
    %p108 = scmp.ne.s32.totalorder %s103, %s105
    %p109 = scmp.eq.s32.totalorder %s10, 0
    %p110 = por %p108, %p109
    %p111 = scmp.ne.s32.totalorder %s103, %s105
    %p112 = scmp.eq.s32.totalorder %s15, 3
    %p113 = por %p111, %p112
    %p114 = scmp.ne.s32.totalorder %s105, %s106
    %p115 = scmp.eq.s32.totalorder %s15, 0
    %p116 = por %p114, %p115
    %p117 = scmp.ne.s32.totalorder %s105, %s106
    %p118 = scmp.eq.s32.totalorder %s16, 3
    %p119 = por %p117, %p118
    %p121 = scmp.ne.s32.totalorder %s106, %s120
    %p122 = scmp.eq.s32.totalorder %s16, 0
    %p123 = por %p121, %p122
    %s124 = ssub.s32 %s17, %s29
    %s125 = ssub.s32 %s18, %s25
    %s126 = sor.u32 %s124, %s125
    %p127 = scmp.eq.s32.totalorder %s126, 0
    %s129 = sadd.s32 %s128, 1
    %s130 = scalar_select %p127, %s128, %s129
    %p133 = pneg %p127
    %p134 = scmp.eq.s32.totalorder %s10, 3
    %p135 = por %p133, %p134
    %p136 = scmp.ne.s32.totalorder %s128, %s131
    %p137 = scmp.eq.s32.totalorder %s10, 0
    %p138 = por %p136, %p137
    %p139 = scmp.ne.s32.totalorder %s128, %s131
    %p140 = scmp.eq.s32.totalorder %s15, 3
    %p141 = por %p139, %p140
    %p142 = scmp.ne.s32.totalorder %s131, %s132
    %p143 = scmp.eq.s32.totalorder %s15, 0
    %p144 = por %p142, %p143
    %p145 = scmp.ne.s32.totalorder %s131, %s132
    %p146 = scmp.eq.s32.totalorder %s16, 3
    %p147 = por %p145, %p146
    %p149 = scmp.ne.s32.totalorder %s132, %s148
    %p150 = scmp.eq.s32.totalorder %s16, 0
    %p151 = por %p149, %p150
    %p152 = scmp.le.s32.totalorder 1, %s10
    %p153 = scmp.lt.s32.totalorder %s10, 5
    %p154 = pnand %p152, %p153
    %p155 = pneg %p154
    // Predicated region
    $region9: #{odefunc.1} parent=5 // pred_check
      _
    $region10: #{odefunc.1} parent=5 // pred_check_branch
      %157 = sbr.rel (%p154) target = $region12
    $region11: #{odefunc.1} parent=5 // pred_region
      %s158 = ssub.s32 %s10, 1
      // Predicated region
      $region13: #{odefunc.1} parent=11 // pred_check
        %p159 = pneg %p48
      $region14: #{odefunc.1} parent=11 // pred_check_branch
        %161 = sbr.rel (%p159) target = $region16
      $region15: #{odefunc.1} parent=11 // pred_region
        %s162 = smul.u32 16, %s20
        %p163 = scmp.lt.s32.totalorder %s162, 15
        %s164 = scalar_select %p163, %s162, 15
        %s165 = smul.addr %s164, 4
        %s166 = scalar_lea.vmem %s0, %s165
        %s167 = smul.u32 16, %s20
      $region16: #{odefunc.1} parent=11 // pred_fallthru
        _
      // Predicated region
      $region17: #{odefunc.1} parent=11 // pred_check
        %p168 = pneg %p95
      $region18: #{odefunc.1} parent=11 // pred_check_branch
        %170 = sbr.rel (%p168) target = $region20
      $region19: #{odefunc.1} parent=11 // pred_region
        _
      $region20: #{odefunc.1} parent=11 // pred_fallthru
        _
      // Predicated region
      $region21: #{odefunc.1} parent=11 // pred_check
        %p171 = pneg %p116
      $region22: #{odefunc.1} parent=11 // pred_check_branch
        %173 = sbr.rel (%p171) target = $region24
      $region23: #{odefunc.1} parent=11 // pred_region
        _
      $region24: #{odefunc.1} parent=11 // pred_fallthru
        _
    $region12: #{odefunc.1} parent=5 // pred_fallthru
      _
    %p174 = scmp.lt.s32.totalorder %s10, 4
    // Predicated region
    $region25: #{odefunc.1} parent=5 // pred_check
      %p175 = pneg %p174
    $region26: #{odefunc.1} parent=5 // pred_check_branch
      %177 = sbr.rel (%p175) target = $region28
    $region27: #{odefunc.1} parent=5 // pred_region
      // Predicated region
      $region29: #{odefunc.1} parent=27 // pred_check
        %p178 = pneg %p68
      $region30: #{odefunc.1} parent=27 // pred_check_branch
        %180 = sbr.rel (%p178) target = $region32
      $region31: #{odefunc.1} parent=27 // pred_region
        %p181 = scmp.lt.s32.totalorder %s17, 3
        %s182 = scalar_select %p181, %s17, 3
        %s183 = smul.addr %s182, 16
        %s184 = smul.addr %s183, 4
        %s185 = scalar_lea.vmem %s1, %s184
      $region32: #{odefunc.1} parent=27 // pred_fallthru
        _
    $region28: #{odefunc.1} parent=5 // pred_fallthru
      _
    %p186 = scmp.le.s32.totalorder 1, %s10
    %p187 = scmp.lt.s32.totalorder %s10, 5
    %p188 = pnand %p186, %p187
    %p189 = pneg %p188
    // Predicated region
    $region33: #{odefunc.1} parent=5 // pred_check
      _
    $region34: #{odefunc.1} parent=5 // pred_check_branch
      %191 = sbr.rel (%p188) target = $region36
    $region35: #{odefunc.1} parent=5 // pred_region
      %s192 = ssub.s32 %s10, 1
      %s193 = smul.u32 16, %s20
      %p194 = scmp.lt.s32.totalorder %s193, 15
      %s195 = scalar_select %p194, %s193, 15
      %s196 = smul.addr %s195, 4
      %s197 = scalar_lea.vmem %s0, %s196
      %p198 = pneg %p48
      %p199 = pneg %p45
      %p200 = scmp.lt.s32.totalorder %s19, 3
      %s201 = scalar_select %p200, %s19, 3
      %s202 = smul.addr %s201, 16
      %s203 = smul.addr %s202, 4
      %s204 = scalar_lea.vmem %s1, %s203
      %p205 = pneg %p74
      %p206 = pneg %p71
      %p207 = pneg %p95
      %p208 = pneg %p92
      %p209 = pneg %p116
      %p210 = pneg %p113
      %p211 = pneg %p144
      %p212 = pneg %p141
      %s213 = smul.u32 16, %s20
      %p214 = scmp.lt.s32.totalorder %s19, 3
      %s215 = scalar_select %p214, %s19, 3
      %p216 = scmp.lt.s32.totalorder %s213, 15
      %s217 = scalar_select %p216, %s213, 15
      %s218 = smul.addr %s215, 16
      %s219 = sadd.s32 %s217, %s218
      %s220 = smul.addr %s219, 8
      %s221 = scalar_lea.vmem %s4, %s220
      %s222 = smul.u32 16, %s20
      %p223 = scmp.lt.s32.totalorder %s222, 15
      %s224 = scalar_select %p223, %s222, 15
      %s225 = smul.addr %s224, 4
      %s226 = scalar_lea.vmem %s0, %s225
      %s227 = smul.u32 16, %s20
      %p228 = scmp.lt.s32.totalorder %s19, 3
      %s229 = scalar_select %p228, %s19, 3
      %s230 = smul.addr %s229, 16
      %s231 = smul.addr %s230, 4
      %s232 = scalar_lea.vmem %s1, %s231
      %s233 = smul.u32 16, %s20
      %p234 = scmp.lt.s32.totalorder %s19, 3
      %s235 = scalar_select %p234, %s19, 3
      %p236 = scmp.lt.s32.totalorder %s233, 15
      %s237 = scalar_select %p236, %s233, 15
      %s238 = smul.addr %s235, 16
      %s239 = sadd.s32 %s237, %s238
      %s240 = smul.addr %s239, 8
      %s241 = scalar_lea.vmem %s4, %s240
      %s242 = smul.u32 16, %s20
      %v244 = vld [vmem:[%s226] sm:$0xf]
      %v245 = vld [vmem:[%s226 + $0x4] sm:$0xf]
      %v246 = vld [vmem:[%s226 + $0x8] sm:$0xf]
      %v247 = vld [vmem:[%s226 + $0xc] sm:$0xf]
      %v248 = vld [vmem:[%s226 + $0x10] sm:$0xf]
      %v249 = vld [vmem:[%s226 + $0x14] sm:$0xf]
      %v250 = vld [vmem:[%s226 + $0x18] sm:$0xf]
      %v251 = vld [vmem:[%s226 + $0x1c] sm:$0xf]
      %v252 = vld [vmem:[%s226 + $0x20] sm:$0xf]
      %v253 = vld [vmem:[%s226 + $0x24] sm:$0xf]
      %v254 = vld [vmem:[%s226 + $0x28] sm:$0xf]
      %v255 = vld [vmem:[%s226 + $0x2c] sm:$0xf]
      %v256 = vld [vmem:[%s226 + $0x30] sm:$0xf]
      %v257 = vld [vmem:[%s226 + $0x34] sm:$0xf]
      %v258 = vld [vmem:[%s226 + $0x38] sm:$0xf]
      %v259 = vld [vmem:[%s226 + $0x3c] sm:$0xf]
      %v260 = vld [vmem:[%s232] sm:$0xf]
      %v261 = vld [vmem:[%s232 + $0x4] sm:$0xf]
      %v262 = vld [vmem:[%s232 + $0x8] sm:$0xf]
      %v263 = vld [vmem:[%s232 + $0xc] sm:$0xf]
      %v264 = vld [vmem:[%s232 + $0x10] sm:$0xf]
      %v265 = vld [vmem:[%s232 + $0x14] sm:$0xf]
      %v266 = vld [vmem:[%s232 + $0x18] sm:$0xf]
      %v267 = vld [vmem:[%s232 + $0x1c] sm:$0xf]
      %v268 = vld [vmem:[%s232 + $0x20] sm:$0xf]
      %v269 = vld [vmem:[%s232 + $0x24] sm:$0xf]
      %v270 = vld [vmem:[%s232 + $0x28] sm:$0xf]
      %v271 = vld [vmem:[%s232 + $0x2c] sm:$0xf]
      %v272 = vld [vmem:[%s232 + $0x30] sm:$0xf]
      %v273 = vld [vmem:[%s232 + $0x34] sm:$0xf]
      %v274 = vld [vmem:[%s232 + $0x38] sm:$0xf]
      %v275 = vld [vmem:[%s232 + $0x3c] sm:$0xf]
      %v292 = vunpack.c.l.b16 %v244
      %v293 = vunpack.c.l.b16 %v245
      %v294 = vunpack.c.l.b16 %v246
      %v295 = vunpack.c.l.b16 %v247
      %v296 = vunpack.c.l.b16 %v248
      %v297 = vunpack.c.l.b16 %v249
      %v298 = vunpack.c.l.b16 %v250
      %v299 = vunpack.c.l.b16 %v251
      %v300 = vunpack.c.l.b16 %v252
      %v301 = vunpack.c.l.b16 %v253
      %v302 = vunpack.c.l.b16 %v254
      %v303 = vunpack.c.l.b16 %v255
      %v304 = vunpack.c.l.b16 %v256
      %v305 = vunpack.c.l.b16 %v257
      %v306 = vunpack.c.l.b16 %v258
      %v307 = vunpack.c.l.b16 %v259
      %v308 = vpack.c.b16 %v293, %v292
      %v309 = vpack.c.b16 %v295, %v294
      %v310 = vpack.c.b16 %v297, %v296
      %v311 = vpack.c.b16 %v299, %v298
      %v312 = vpack.c.b16 %v301, %v300
      %v313 = vpack.c.b16 %v303, %v302
      %v314 = vpack.c.b16 %v305, %v304
      %v315 = vpack.c.b16 %v307, %v306
      %v340 = vunpack.c.l.b16 %v260
      %v341 = vunpack.c.l.b16 %v261
      %v342 = vunpack.c.l.b16 %v262
      %v343 = vunpack.c.l.b16 %v263
      %v344 = vunpack.c.l.b16 %v264
      %v345 = vunpack.c.l.b16 %v265
      %v346 = vunpack.c.l.b16 %v266
      %v347 = vunpack.c.l.b16 %v267
      %v348 = vunpack.c.l.b16 %v268
      %v349 = vunpack.c.l.b16 %v269
      %v350 = vunpack.c.l.b16 %v270
      %v351 = vunpack.c.l.b16 %v271
      %v352 = vunpack.c.l.b16 %v272
      %v353 = vunpack.c.l.b16 %v273
      %v354 = vunpack.c.l.b16 %v274
      %v355 = vunpack.c.l.b16 %v275
      %v356 = vpack.c.b16 %v341, %v340
      %v357 = vpack.c.b16 %v343, %v342
      %v358 = vpack.c.b16 %v345, %v344
      %v359 = vpack.c.b16 %v347, %v346
      %v360 = vpack.c.b16 %v349, %v348
      %v361 = vpack.c.b16 %v351, %v350
      %v362 = vpack.c.b16 %v353, %v352
      %v363 = vpack.c.b16 %v355, %v354
      %372 = vmatprep.subr.bf16.mxu0 0
      %373 = vmatpush1.bf16.msra.mxu0 %v356
      %374 = vmatprep.subr.bf16.mxu0 0
      %375 = vmatpush1.bf16.msra.mxu0 %v357
      %376 = vmatprep.subr.bf16.mxu0 0
      %377 = vmatpush1.bf16.msra.mxu0 %v358
      %378 = vmatprep.subr.bf16.mxu0 0
      %379 = vmatpush1.bf16.msra.mxu0 %v359
      %380 = vmatprep.subr.bf16.mxu0 0
      %381 = vmatpush1.bf16.msra.mxu0 %v360
      %382 = vmatprep.subr.bf16.mxu0 0
      %383 = vmatpush1.bf16.msra.mxu0 %v361
      %384 = vmatprep.subr.bf16.mxu0 0
      %385 = vmatpush1.bf16.msra.mxu0 %v362
      %386 = vmatprep.subr.bf16.mxu0 0
      %387 = vmatpush1.bf16.msra.mxu0 %v363
      %388 = vmatprep.subr.bf16.mxu0 0
      %389 = vmatpush1.bf16.msra.mxu0 0
      %390 = vmatprep.subr.bf16.mxu0 0
      %391 = vmatpush1.bf16.msra.mxu0 0
      %392 = vmatprep.subr.bf16.mxu0 0
      %393 = vmatpush1.bf16.msra.mxu0 0
      %394 = vmatprep.subr.bf16.mxu0 0
      %395 = vmatpush1.bf16.msra.mxu0 0
      %396 = vmatprep.subr.bf16.mxu0 0
      %397 = vmatpush1.bf16.msra.mxu0 0
      %398 = vmatprep.subr.bf16.mxu0 0
      %399 = vmatpush1.bf16.msra.mxu0 0
      %400 = vmatprep.subr.bf16.mxu0 0
      %401 = vmatpush1.bf16.msra.mxu0 0
      %402 = vmatprep.subr.bf16.mxu0 0
      %403 = vmatpush1.bf16.msra.mxu0 0
      %404 = vmatprep.mubr.bf16.mxu0 0
      %405 = vmatmul.mubr.bf16.gmra.mrb[0].mxu0 %v308
      %v406 = vpop.f32.mrb[0].mxu0
      %v407 = vadd.f32 0.0, %v406
      %v408 = vpop.f32.mrb[0].mxu0
      %v409 = vpop.f32.mrb[0].mxu0
      %v410 = vadd.f32 0.0, %v409
      %v411 = vpop.f32.mrb[0].mxu0
      %412 = vmatprep.mubr.bf16.mxu0 0
      %413 = vmatmul.mubr.bf16.gmra.mrb[0].mxu0 %v309
      %v414 = vpop.f32.mrb[0].mxu0
      %v415 = vadd.f32 0.0, %v414
      %v416 = vpop.f32.mrb[0].mxu0
      %v417 = vpop.f32.mrb[0].mxu0
      %v418 = vadd.f32 0.0, %v417
      %v419 = vpop.f32.mrb[0].mxu0
      %420 = vmatprep.mubr.bf16.mxu0 0
      %421 = vmatmul.mubr.bf16.gmra.mrb[0].mxu0 %v310
      %v422 = vpop.f32.mrb[0].mxu0
      %v423 = vadd.f32 0.0, %v422
      %v424 = vpop.f32.mrb[0].mxu0
      %v425 = vpop.f32.mrb[0].mxu0
      %v426 = vadd.f32 0.0, %v425
      %v427 = vpop.f32.mrb[0].mxu0
      %428 = vmatprep.mubr.bf16.mxu0 0
      %429 = vmatmul.mubr.bf16.gmra.mrb[0].mxu0 %v311
      %v430 = vpop.f32.mrb[0].mxu0
      %v431 = vadd.f32 0.0, %v430
      %v432 = vpop.f32.mrb[0].mxu0
      %v433 = vpop.f32.mrb[0].mxu0
      %v434 = vadd.f32 0.0, %v433
      %v435 = vpop.f32.mrb[0].mxu0
      %436 = vmatprep.mubr.bf16.mxu0 0
      %437 = vmatmul.mubr.bf16.gmra.mrb[0].mxu0 %v312
      %v438 = vpop.f32.mrb[0].mxu0
      %v439 = vadd.f32 0.0, %v438
      %v440 = vpop.f32.mrb[0].mxu0
      %v441 = vpop.f32.mrb[0].mxu0
      %v442 = vadd.f32 0.0, %v441
      %v443 = vpop.f32.mrb[0].mxu0
      %444 = vmatprep.mubr.bf16.mxu0 0
      %445 = vmatmul.mubr.bf16.gmra.mrb[0].mxu0 %v313
      %v446 = vpop.f32.mrb[0].mxu0
      %v447 = vadd.f32 0.0, %v446
      %v448 = vpop.f32.mrb[0].mxu0
      %v449 = vpop.f32.mrb[0].mxu0
      %v450 = vadd.f32 0.0, %v449
      %v451 = vpop.f32.mrb[0].mxu0
      %452 = vmatprep.mubr.bf16.mxu0 0
      %453 = vmatmul.mubr.bf16.gmra.mrb[0].mxu0 %v314
      %v454 = vpop.f32.mrb[0].mxu0
      %v455 = vadd.f32 0.0, %v454
      %v456 = vpop.f32.mrb[0].mxu0
      %v457 = vpop.f32.mrb[0].mxu0
      %v458 = vadd.f32 0.0, %v457
      %v459 = vpop.f32.mrb[0].mxu0
      %460 = vmatprep.mubr.bf16.mxu0 0
      %461 = vmatmul.mubr.bf16.gmra.mrb[0].mxu0 %v315
      %v462 = vpop.f32.mrb[0].mxu0
      %v463 = vadd.f32 0.0, %v462
      %v464 = vpop.f32.mrb[0].mxu0
      %v465 = vpop.f32.mrb[0].mxu0
      %v466 = vadd.f32 0.0, %v465
      %v467 = vpop.f32.mrb[0].mxu0
      %468 = vdwg.mxu0
      %v469 = vpack.c.bf16 %v410, %v407
      %v470 = vpack.c.bf16 %v418, %v415
      %v471 = vpack.c.bf16 %v426, %v423
      %v472 = vpack.c.bf16 %v434, %v431
      %v473 = vpack.c.bf16 %v442, %v439
      %v474 = vpack.c.bf16 %v450, %v447
      %v475 = vpack.c.bf16 %v458, %v455
      %v476 = vpack.c.bf16 %v466, %v463
      %v477 = vld [vmem:[%s2] sm:$0xf]
      %v478 = vld [vmem:[%s2 + $0x4] sm:$0xf]
      %v479 = vld [vmem:[%s2 + $0x8] sm:$0xf]
      %v480 = vld [vmem:[%s2 + $0xc] sm:$0xf]
      %v481 = vld [vmem:[%s2 + $0x10] sm:$0xf]
      %v482 = vld [vmem:[%s2 + $0x14] sm:$0xf]
      %v483 = vld [vmem:[%s2 + $0x18] sm:$0xf]
      %v484 = vld [vmem:[%s2 + $0x1c] sm:$0xf]
      %v485 = vld [vmem:[%s2 + $0x20] sm:$0xf]
      %v486 = vld [vmem:[%s2 + $0x24] sm:$0xf]
      %v487 = vld [vmem:[%s2 + $0x28] sm:$0xf]
      %v488 = vld [vmem:[%s2 + $0x2c] sm:$0xf]
      %v489 = vld [vmem:[%s2 + $0x30] sm:$0xf]
      %v490 = vld [vmem:[%s2 + $0x34] sm:$0xf]
      %v491 = vld [vmem:[%s2 + $0x38] sm:$0xf]
      %v492 = vld [vmem:[%s2 + $0x3c] sm:$0xf]
      %v493 = vld [vmem:[%s3] sm:$0x1]
      %v495 = vlaneseq
      %v496 = vshrl.u32 %v495, 7
      %v497 = vsub.s32 0, %v496
      %v498 = vrot.slane %v493, %v497
      %v516 = vunpack.c.l.b16 %v477
      %v517 = vunpack.c.l.b16 %v478
      %v518 = vunpack.c.l.b16 %v479
      %v519 = vunpack.c.l.b16 %v480
      %v520 = vunpack.c.l.b16 %v481
      %v521 = vunpack.c.l.b16 %v482
      %v522 = vunpack.c.l.b16 %v483
      %v523 = vunpack.c.l.b16 %v484
      %v524 = vunpack.c.l.b16 %v485
      %v525 = vunpack.c.l.b16 %v486
      %v526 = vunpack.c.l.b16 %v487
      %v527 = vunpack.c.l.b16 %v488
      %v528 = vunpack.c.l.b16 %v489
      %v529 = vunpack.c.l.b16 %v490
      %v530 = vunpack.c.l.b16 %v491
      %v531 = vunpack.c.l.b16 %v492
      %v532 = vpack.c.b16 %v517, %v516
      %v533 = vpack.c.b16 %v519, %v518
      %v534 = vpack.c.b16 %v521, %v520
      %v535 = vpack.c.b16 %v523, %v522
      %v536 = vpack.c.b16 %v525, %v524
      %v537 = vpack.c.b16 %v527, %v526
      %v538 = vpack.c.b16 %v529, %v528
      %v539 = vpack.c.b16 %v531, %v530
      %548 = vmatprep.subr.bf16.mxu0 0
      %549 = vmatpush1.bf16.msra.mxu0 %v532
      %550 = vmatprep.subr.bf16.mxu0 0
      %551 = vmatpush1.bf16.msra.mxu0 %v533
      %552 = vmatprep.subr.bf16.mxu0 0
      %553 = vmatpush1.bf16.msra.mxu0 %v534
      %554 = vmatprep.subr.bf16.mxu0 0
      %555 = vmatpush1.bf16.msra.mxu0 %v535
      %556 = vmatprep.subr.bf16.mxu0 0
      %557 = vmatpush1.bf16.msra.mxu0 %v536
      %558 = vmatprep.subr.bf16.mxu0 0
      %559 = vmatpush1.bf16.msra.mxu0 %v537
      %560 = vmatprep.subr.bf16.mxu0 0
      %561 = vmatpush1.bf16.msra.mxu0 %v538
      %562 = vmatprep.subr.bf16.mxu0 0
      %563 = vmatpush1.bf16.msra.mxu0 %v539
      %564 = vmatprep.subr.bf16.mxu0 0
      %565 = vmatpush1.bf16.msra.mxu0 0
      %566 = vmatprep.subr.bf16.mxu0 0
      %567 = vmatpush1.bf16.msra.mxu0 0
      %568 = vmatprep.subr.bf16.mxu0 0
      %569 = vmatpush1.bf16.msra.mxu0 0
      %570 = vmatprep.subr.bf16.mxu0 0
      %571 = vmatpush1.bf16.msra.mxu0 0
      %572 = vmatprep.subr.bf16.mxu0 0
      %573 = vmatpush1.bf16.msra.mxu0 0
      %574 = vmatprep.subr.bf16.mxu0 0
      %575 = vmatpush1.bf16.msra.mxu0 0
      %576 = vmatprep.subr.bf16.mxu0 0
      %577 = vmatpush1.bf16.msra.mxu0 0
      %578 = vmatprep.subr.bf16.mxu0 0
      %579 = vmatpush1.bf16.msra.mxu0 0
      %580 = vmatprep.mubr.bf16.mxu0 0
      %581 = vmatmul.mubr.bf16.gmra.mrb[0].mxu0 %v469
      %v582 = vpop.f32.mrb[0].mxu0
      %v583 = vadd.f32 %v498, %v582
      %v584 = vpop.f32.mrb[0].mxu0
      %v585 = vpop.f32.mrb[0].mxu0
      %v586 = vadd.f32 %v498, %v585
      %v587 = vpop.f32.mrb[0].mxu0
      %588 = vmatprep.mubr.bf16.mxu0 0
      %589 = vmatmul.mubr.bf16.gmra.mrb[0].mxu0 %v470
      %v590 = vpop.f32.mrb[0].mxu0
      %v591 = vadd.f32 %v498, %v590
      %v592 = vpop.f32.mrb[0].mxu0
      %v593 = vpop.f32.mrb[0].mxu0
      %v594 = vadd.f32 %v498, %v593
      %v595 = vpop.f32.mrb[0].mxu0
      %596 = vmatprep.mubr.bf16.mxu0 0
      %597 = vmatmul.mubr.bf16.gmra.mrb[0].mxu0 %v471
      %v598 = vpop.f32.mrb[0].mxu0
      %v599 = vadd.f32 %v498, %v598
      %v600 = vpop.f32.mrb[0].mxu0
      %v601 = vpop.f32.mrb[0].mxu0
      %v602 = vadd.f32 %v498, %v601
      %v603 = vpop.f32.mrb[0].mxu0
      %604 = vmatprep.mubr.bf16.mxu0 0
      %605 = vmatmul.mubr.bf16.gmra.mrb[0].mxu0 %v472
      %v606 = vpop.f32.mrb[0].mxu0
      %v607 = vadd.f32 %v498, %v606
      %v608 = vpop.f32.mrb[0].mxu0
      %v609 = vpop.f32.mrb[0].mxu0
      %v610 = vadd.f32 %v498, %v609
      %v611 = vpop.f32.mrb[0].mxu0
      %612 = vmatprep.mubr.bf16.mxu0 0
      %613 = vmatmul.mubr.bf16.gmra.mrb[0].mxu0 %v473
      %v614 = vpop.f32.mrb[0].mxu0
      %v615 = vadd.f32 %v498, %v614
      %v616 = vpop.f32.mrb[0].mxu0
      %v617 = vpop.f32.mrb[0].mxu0
      %v618 = vadd.f32 %v498, %v617
      %v619 = vpop.f32.mrb[0].mxu0
      %620 = vmatprep.mubr.bf16.mxu0 0
      %621 = vmatmul.mubr.bf16.gmra.mrb[0].mxu0 %v474
      %v622 = vpop.f32.mrb[0].mxu0
      %v623 = vadd.f32 %v498, %v622
      %v624 = vpop.f32.mrb[0].mxu0
      %v625 = vpop.f32.mrb[0].mxu0
      %v626 = vadd.f32 %v498, %v625
      %v627 = vpop.f32.mrb[0].mxu0
      %628 = vmatprep.mubr.bf16.mxu0 0
      %629 = vmatmul.mubr.bf16.gmra.mrb[0].mxu0 %v475
      %v630 = vpop.f32.mrb[0].mxu0
      %v631 = vadd.f32 %v498, %v630
      %v632 = vpop.f32.mrb[0].mxu0
      %v633 = vpop.f32.mrb[0].mxu0
      %v634 = vadd.f32 %v498, %v633
      %v635 = vpop.f32.mrb[0].mxu0
      %636 = vmatprep.mubr.bf16.mxu0 0
      %637 = vmatmul.mubr.bf16.gmra.mrb[0].mxu0 %v476
      %v638 = vpop.f32.mrb[0].mxu0
      %v639 = vadd.f32 %v498, %v638
      %v640 = vpop.f32.mrb[0].mxu0
      %v641 = vpop.f32.mrb[0].mxu0
      %v642 = vadd.f32 %v498, %v641
      %v643 = vpop.f32.mrb[0].mxu0
      %644 = vdwg.mxu0
      %v645 = vtanh.pop %v583
      %v646 = vtanh.pop %v586
      %v647 = vtanh.pop %v591
      %v648 = vtanh.pop %v594
      %v649 = vtanh.pop %v599
      %v650 = vtanh.pop %v602
      %v651 = vtanh.pop %v607
      %v652 = vtanh.pop %v610
      %v653 = vtanh.pop %v615
      %v654 = vtanh.pop %v618
      %v655 = vtanh.pop %v623
      %v656 = vtanh.pop %v626
      %v657 = vtanh.pop %v631
      %v658 = vtanh.pop %v634
      %v659 = vtanh.pop %v639
      %v660 = vtanh.pop %v642
      %661 = vst [vmem:[%s241] sm:$0xff] %v645
      %662 = vst [vmem:[%s241 + $0x8] sm:$0xff] %v646
      %663 = vst [vmem:[%s241 + $0x10] sm:$0xff] %v647
      %664 = vst [vmem:[%s241 + $0x18] sm:$0xff] %v648
      %665 = vst [vmem:[%s241 + $0x20] sm:$0xff] %v649
      %666 = vst [vmem:[%s241 + $0x28] sm:$0xff] %v650
      %667 = vst [vmem:[%s241 + $0x30] sm:$0xff] %v651
      %668 = vst [vmem:[%s241 + $0x38] sm:$0xff] %v652
      %669 = vst [vmem:[%s241 + $0x40] sm:$0xff] %v653
      %670 = vst [vmem:[%s241 + $0x48] sm:$0xff] %v654
      %671 = vst [vmem:[%s241 + $0x50] sm:$0xff] %v655
      %672 = vst [vmem:[%s241 + $0x58] sm:$0xff] %v656
      %673 = vst [vmem:[%s241 + $0x60] sm:$0xff] %v657
      %674 = vst [vmem:[%s241 + $0x68] sm:$0xff] %v658
      %675 = vst [vmem:[%s241 + $0x70] sm:$0xff] %v659
      %676 = vst [vmem:[%s241 + $0x78] sm:$0xff] %v660
      %s677 = smul.u32 16, %s20
      %p678 = scmp.lt.s32.totalorder %s19, 3
      %s679 = scalar_select %p678, %s19, 3
      %p680 = scmp.lt.s32.totalorder %s677, 15
      %s681 = scalar_select %p680, %s677, 15
      %s682 = smul.addr %s679, 16
      %s683 = sadd.s32 %s681, %s682
      %s684 = smul.addr %s683, 8
      %s685 = scalar_lea.vmem %s4, %s684
      // Predicated region
      $region37: #{odefunc.1} parent=35 // pred_check
        %p686 = pneg %p141
      $region38: #{odefunc.1} parent=35 // pred_check_branch
        %688 = sbr.rel (%p686) target = $region40
      $region39: #{odefunc.1} parent=35 // pred_region
        %s689 = smul.u32 16, %s20
      $region40: #{odefunc.1} parent=35 // pred_fallthru
        _
    $region36: #{odefunc.1} parent=5 // pred_fallthru
      _
    %p690 = scmp.le.s32.totalorder 2, %s10
    // Predicated region
    $region41: #{odefunc.1} parent=5 // pred_check
      %p691 = pneg %p690
    $region42: #{odefunc.1} parent=5 // pred_check_branch
      %693 = sbr.rel (%p691) target = $region44
    $region43: #{odefunc.1} parent=5 // pred_region
      %s694 = ssub.s32 %s10, 2
      // Predicated region
      $region45: #{odefunc.1} parent=43 // pred_check
        %p695 = pneg %p147
      $region46: #{odefunc.1} parent=43 // pred_check_branch
        %697 = sbr.rel (%p695) target = $region48
      $region47: #{odefunc.1} parent=43 // pred_region
        %s698 = smul.u32 16, %s22
        %p699 = scmp.lt.s32.totalorder %s21, 3
        %s700 = scalar_select %p699, %s21, 3
        %p701 = scmp.lt.s32.totalorder %s698, 15
        %s702 = scalar_select %p701, %s698, 15
        %s703 = smul.addr %s700, 16
        %s704 = sadd.s32 %s702, %s703
        %s705 = smul.addr %s704, 8
        %s706 = scalar_lea.vmem %s4, %s705
      $region48: #{odefunc.1} parent=43 // pred_fallthru
        _
    $region44: #{odefunc.1} parent=5 // pred_fallthru
      _
  $region6: #{odefunc.1} parent=0 // loop_footer
    %s14 = sadd.s32 1, %s10
  $region7: #{odefunc.1} parent=0 // loop_footer_branch
    %9 = sbr.rel target = $region3
  $region8: #{odefunc.1} parent=0 // loop_exit
    _

</llo_original>
